<compile_context>
chip_gen: v6e
topology: v6e:2x2x1
jax: 0.10.0
libtpu: 0.0.40
codegen_flags: <defaults>
</compile_context>

<pallas_src>
import jax
import jax.numpy as jnp
from jax.experimental import pallas as pl
from jax.experimental.pallas import tpu as pltpu


def _uncertainty_loss_kernel(x_ref, out_ref):
    # x_ref: (2, num_task) f32 in VMEM; row 0 = phi, row 1 = losses.
    x = x_ref[...]
    phi = x[0:1, :]        # (1, num_task)
    losses = x[1:2, :]     # (1, num_task)
    # Single fused reduction: dot(exp(-phi), losses) + sum(phi / 2).
    total = jnp.sum(jnp.exp(-phi) * losses + 0.5 * phi)   # rank-0 f32
    out_ref[0] = total     # scalar result via SMEM


def uncertainty_loss(losses: jax.Array, phi: jax.Array) -> jax.Array:
    """Compute the uncertainty (multi-task) loss with a Pallas TPU kernel.

    Args:
      losses: f32 vector of shape (num_task,), the per-task losses.
      phi:    f32 vector of shape (num_task,), the learned log-variance params.
    Returns:
      A scalar f32 (shape ()) uncertainty loss.
    """
    num_task = losses.shape[0]
    assert phi.shape == (num_task,)

    # One stacked operand -> one input DMA.
    stacked = jnp.stack(
        [phi.astype(jnp.float32), losses.astype(jnp.float32)], axis=0
    )  # (2, num_task)

    out = pl.pallas_call(
        _uncertainty_loss_kernel,
        out_shape=jax.ShapeDtypeStruct((1,), jnp.float32),
        in_specs=[
            # Full-extent block (block == array shape), gridless.
            pl.BlockSpec((2, num_task), lambda: (0, 0)),
        ],
        out_specs=pl.BlockSpec(memory_space=pltpu.SMEM),
        cost_estimate=pl.CostEstimate(
            flops=3 * num_task,
            transcendentals=num_task,
            bytes_accessed=8 * num_task + 4,
        ),
    )(stacked)
    return out[0]


# NOTE: for real workloads this loss should be fused into the kernel that
# produces `losses` (or batched across many (phi, losses) pairs); a standalone
# custom call for ~24 FLOPs is launch-overhead bound on every TPU generation.
# TODO(synk): fuse into the producer kernel / batch per-call when integrating.


if __name__ == "__main__":
    num_task = 8

    # Parameter init identical to the PyTorch module: phi = zeros(num_task).
    phi = jnp.zeros((num_task,), dtype=jnp.float32)

    # Deterministic example "losses" vector.
    key = jax.random.PRNGKey(0)
    losses = jax.random.uniform(key, (num_task,), dtype=jnp.float32)

    # jit the wrapper so the stack / slice fuse into one dispatch.
    fn = jax.jit(uncertainty_loss)
    result = jax.block_until_ready(fn(losses, phi))

    # Reference check in plain JAX (same math as the PyTorch module).
    ref = jnp.dot(jnp.exp(-phi), losses) + jnp.sum(phi / 2.0)
    assert jnp.allclose(result, ref, rtol=1e-6, atol=1e-6), (result, ref)

    print("KERNEL_OK")
</pallas_src>

<mosaic_0001>
module attributes {stable_mosaic.version = 11 : i64} {
  func.func @_uncertainty_loss_kernel(%arg0: memref<2x8xf32, #tpu.memory_space<vmem>>, %arg1: memref<1xf32, #tpu.memory_space<smem>>) attributes {dimension_semantics = [], scalar_prefetch = 0 : i64, scratch_operands = 0 : i64, tpu.core_type = #tpu.core_type<tc>} {
    %c0 = arith.constant 0 : index
    %c0_0 = arith.constant 0 : index
    %0 = vector.load %arg0[%c0, %c0_0] : memref<2x8xf32, #tpu.memory_space<vmem>>, vector<2x8xf32>
    %1 = vector.extract_strided_slice %0 {offsets = [0, 0], sizes = [1, 8], strides = [1, 1]} : vector<2x8xf32> to vector<1x8xf32>
    %2 = vector.extract_strided_slice %0 {offsets = [1, 0], sizes = [1, 8], strides = [1, 1]} : vector<2x8xf32> to vector<1x8xf32>
    %cst = arith.constant 0.000000e+00 : f32
    %3 = vector.broadcast %cst : f32 to vector<1x8xf32>
    %4 = arith.subf %3, %1 : vector<1x8xf32>
    %5 = math.exp %4 : vector<1x8xf32>
    %6 = arith.mulf %5, %2 : vector<1x8xf32>
    %cst_1 = arith.constant 5.000000e-01 : f32
    %7 = vector.broadcast %cst_1 : f32 to vector<1x8xf32>
    %8 = arith.mulf %7, %1 : vector<1x8xf32>
    %9 = arith.addf %6, %8 : vector<1x8xf32>
    %10 = vector.shape_cast %9 : vector<1x8xf32> to vector<1x1x8xf32>
    %cst_2 = arith.constant dense<0.000000e+00> : vector<1xf32>
    %11 = vector.multi_reduction <add>, %10, %cst_2 [1, 2] : vector<1x1x8xf32> to vector<1xf32>
    %12 = vector.shape_cast %11 : vector<1xf32> to vector<1x1x1xf32>
    %13 = vector.extract %12[0, 0, 0] : f32 from vector<1x1x1xf32>
    %c0_3 = arith.constant 0 : index
    %14 = memref.load %arg1[%c0_3] : memref<1xf32, #tpu.memory_space<smem>>
    memref.store %13, %arg1[%c0_3] : memref<1xf32, #tpu.memory_space<smem>>
    return
  }
}

</mosaic_0001>

<llo_original>
// kernel: uncertainty_loss.1
$region0: #{uncertainty_loss.1}
  #allocation0 [shape = 'u32[]', space=smem, size = 0x4, offset = 0x4, fixed_abs, tag = 'smem constant byte address 0x4 - core index']
  #allocation1 [shape = 'u32[144,128]{1,0:T(1,128)}', space=vmem, size = 0x12000, scoped, tag = 'internal scratch']
  %s0 = inlined_call_operand.vmem [shape: f32[2,8], index: 0, kind: input, shape index: {}]
  %s1 = inlined_call_operand.hbm [shape: f32[1], index: 1, kind: output, shape index: {}]
  %s2 = sld [smem:[#allocation0]]
  $region14: #{uncertainty_loss.1} parent=0
    _
  %s4 = ssub.s32 1, %s2
  %s5 = scalar_select 0, %s4, %s2
  $region1: #{uncertainty_loss.1} parent=0
    #allocation2 [shape = 'u8[512]{0}', space=smem, size = 0x200, scoped, tag = 'output window, operand 0, single buffered']
    #allocation3 [shape = 's32[1]{0}', space=sflag, size = 0x4, scoped, tag = 'scoped memory for uncertainty_loss.1']
    %6 = vsyncpa [#allocation3], 0
    // Predicated region
    $region2: #{uncertainty_loss.1} parent=1 // pred_check
      _
    $region3: #{uncertainty_loss.1} parent=1 // pred_check_branch
      %8 = sbr.rel (0) target = $region5
    $region4: #{uncertainty_loss.1} parent=1 // pred_region
      _
    $region5: #{uncertainty_loss.1} parent=1 // pred_fallthru
      _
    %v9 = vld [vmem:[%s0] sm:$0x3]
    %v10 = vsub.f32 0.0, %v9
    %v11 = vmul.f32 %v10, 1.442695
    %v12 = vpow.pop %v11
    %v14 = vrot.slane %v9, 1
    %v16 = vmul.f32 %v12, %v14
    %v17 = vmul.f32 %v9, 0.5
    %v18 = vadd.f32 %v16, %v17
    %vm19 = vcmask 57344
    %v20 = vsel %vm19, %v18, 0.0
    %21 = vadd.xlane.f32.xlu0 %v20
    %v22 = vpop.xlane.xlu0 %21
    %v23 = vrot.slane %v22, 4
    %v24 = vadd.f32 %v22, %v23
    %v25 = vrot.slane %v24, 2
    %v26 = vadd.f32 %v24, %v25
    %v27 = vrot.slane %v26, 1
    %v28 = vadd.f32 %v26, %v27
    %s29 = vtos %v28
    %s30 = scalar_lea.smem [#allocation2], 0
    %31 = sst [smem:[%s30]] %s29
    // Predicated region
    $region6: #{uncertainty_loss.1} parent=1 // pred_check
      _
    $region7: #{uncertainty_loss.1} parent=1 // pred_check_branch
      %33 = sbr.rel (0) target = $region9
    $region8: #{uncertainty_loss.1} parent=1 // pred_region
      %s35 = ssub.s32 16, 16
      %36 = vsyncadd [#allocation3], %s35
      %39 = dma.smem_to_hbm [#allocation2], 16, %s1, [#allocation3]
    $region9: #{uncertainty_loss.1} parent=1 // pred_fallthru
      _
    // Predicated region
    $region10: #{uncertainty_loss.1} parent=1 // pred_check
      _
    $region11: #{uncertainty_loss.1} parent=1 // pred_check_branch
      %41 = sbr.rel (0) target = $region13
    $region12: #{uncertainty_loss.1} parent=1 // pred_region
      %42 = dma.done [#allocation3], 16
    $region13: #{uncertainty_loss.1} parent=1 // pred_fallthru
      _
    %43 = sfence
    %44 = vsyncpa [#allocation3], 1

</llo_original>
